<compile_context>
chip_gen: v7x
topology: tpu7x:2x2x1
jax: 0.10.0
libtpu: 0.0.40
codegen_flags: <defaults>
</compile_context>

<pallas_src>
import functools

import jax
import jax.numpy as jnp
from jax.experimental import pallas as pl
from jax.experimental.pallas import tpu as pltpu

_HALO = 3  # rows of input context required by the three chained 3x3 convs


# --------------------------------------------------------------------------- #
# pltpu.roll convention probe (belt-and-suspenders for the shift sign)         #
# --------------------------------------------------------------------------- #
@functools.cache
def _roll_matches_jnp() -> bool:
    """True iff pltpu.roll(x, s, ax)[i] == x[(i - s) % n] (jnp.roll convention)."""

    def kernel(x_ref, o_ref):
        o_ref[...] = pltpu.roll(x_ref[...], 1, 1)

    x = jnp.broadcast_to(jnp.arange(128, dtype=jnp.float32), (8, 128))
    out = pl.pallas_call(
        kernel, out_shape=jax.ShapeDtypeStruct((8, 128), jnp.float32))(x)
    return bool(out[0, 0] == 127.0)


# --------------------------------------------------------------------------- #
# In-kernel helpers                                                            #
# --------------------------------------------------------------------------- #
def _conv3x3(xbuf, w_ref, b_ref, lout, w_img, roll_sign, mask_l, mask_r):
    """3x3 'same' conv of a row-haloed slab as ONE MXU matmul.

    xbuf   : (Cin, Lin) activation slab, Lin = lout + 2*W (one halo row per
             side); lanes are row-major (row*W + col).
    w_ref  : (Cout, 9*Cin) weights, contraction rows ordered (kh*3+kw)*Cin+ci.
    b_ref  : (Cout, 1) f32 bias.
    lout   : output lane count (= Lin - 2*W).
    mask_l / mask_r : (1, >=lout) 0/1 column-validity masks (col>0 / col<W-1).
    Returns (Cout, lout) float32.
    """
    lin = xbuf.shape[1]
    taps = []
    for k in range(9):
        kh, kw = divmod(k, 3)
        d = (kh - 1) * w_img + (kw - 1)              # flat offset of the tap
        shift = (roll_sign * -(w_img + d)) % lin     # bring tap value to lane p
        r = pltpu.roll(xbuf, shift, 1) if shift else xbuf   # XLU lane rotation
        r = r[:, :lout]
        if kw == 0:
            r = r * mask_l[:, :lout]                 # zero reads across left border
        elif kw == 2:
            r = r * mask_r[:, :lout]                 # zero reads across right border
        taps.append(r)
    slab = jnp.concatenate(taps, axis=0)             # (9*Cin, lout) im2col
    out = jnp.dot(w_ref[...], slab, preferred_element_type=jnp.float32)
    return out + b_ref[...]                          # lane-broadcast bias


def _feafusion_kernel(x1_ref, x2_ref, w1_ref, b1_ref, w2_ref, b2_ref,
                      wf_ref, bf_ref, out_ref, *,
                      img_h, img_w, ht, roll_sign, cdt):
    w = img_w
    l1 = (ht + 4) * w          # gate frame   : rows [-2, ht+2) of the tile
    l2 = (ht + 2) * w          # y frame      : rows [-1, ht+1)
    l3 = ht * w                # output frame : rows [ 0, ht)

    x1 = x1_ref[...]           # (C, (ht+6)*w) in compute dtype
    x2 = x2_ref[...]

    # Left/right column masks generated in-kernel (a few VPU compares).
    col = jax.lax.broadcasted_iota(jnp.int32, (1, l1), 1) % w
    mask_l = (col > 0).astype(cdt)
    mask_r = (col < w - 1).astype(cdt)

    # wweight = sigmoid(layer1(x1 + x2)); gate = 1 + wweight.
    s = _conv3x3(x1 + x2, w1_ref, b1_ref, l1, w, roll_sign, mask_l, mask_r)
    gate = (1.0 + jax.nn.sigmoid(s)).astype(cdt)     # (C, l1)

    # Gated activations on the gate frame (centre slice of the input buffer).
    x1c = x1[:, w:w + l1]
    x2c = x2[:, w:w + l1]
    xg = jnp.concatenate([x1c * gate, x2c * gate], axis=0)   # (2C, l1)

    # layer2_1 + layer2_2 fused into a single (C4p, 9*2C) matmul.
    y = _conv3x3(xg, w2_ref, b2_ref, l2, w, roll_sign, mask_l, mask_r)

    # layer_fu sees zero padding outside the image: zero out-of-image y rows.
    row = jax.lax.broadcasted_iota(jnp.int32, (1, l2), 1) // w
    grow = pl.program_id(1) * ht - 1 + row           # global image row of y
    yv = y.astype(cdt) * ((grow >= 0) & (grow < img_h)).astype(cdt)

    out = _conv3x3(yv, wf_ref, bf_ref, l3, w, roll_sign, mask_l, mask_r)
    out_ref[...] = jnp.maximum(out, 0.0).astype(out_ref.dtype)


# --------------------------------------------------------------------------- #
# Wrapper-side helpers                                                         #
# --------------------------------------------------------------------------- #
def _wmat(w_hwio, cdt, cin_pad=0, cout_pad=0):
    """(3, 3, Cin, Cout) HWIO -> (Cout, 9*Cin) matmul form (taps outer)."""
    if cin_pad:
        w_hwio = jnp.pad(w_hwio, ((0, 0), (0, 0), (0, cin_pad), (0, 0)))
    m = jnp.transpose(w_hwio, (3, 0, 1, 2)).reshape(w_hwio.shape[3], -1)
    if cout_pad:
        m = jnp.pad(m, ((0, cout_pad), (0, 0)))
    return m.astype(cdt)


def _bcol(b, pad=0):
    v = b.reshape(-1, 1).astype(jnp.float32)
    return jnp.pad(v, ((0, pad), (0, 0))) if pad else v


def _vmem_estimate(ht, W, C, c4p, itemsize):
    """Rough per-grid-step VMEM bytes (blocks double-buffered + live slabs)."""
    l0, l1, l2, l3 = ((ht + k) * W for k in (6, 4, 2, 0))
    b = 2 * 2 * C * l0 * itemsize            # x1, x2 input blocks (x2 buffers)
    b += 2 * C * l3 * 4                      # output block (x2 buffers, f32)
    b += 9 * C * l1 * itemsize               # layer1 im2col slab
    b += 9 * 2 * C * l2 * itemsize           # fused layer2 im2col slab
    b += 9 * c4p * l3 * itemsize             # layer_fu im2col slab
    b += C * l1 * (4 + 3 * itemsize)         # gate + gated activations
    b += c4p * l2 * (4 + itemsize)           # y (f32 + compute dtype)
    return b


def _pick_row_tile(H, W, C, c4p, itemsize, budget=24 * 2**20):
    """Largest divisor of H whose per-tile VMEM estimate fits `budget`,
    preferring tiles whose output lane count is a multiple of 128."""
    divs = [d for d in range(1, H + 1) if H % d == 0]
    fitting = [d for d in divs if _vmem_estimate(d, W, C, c4p, itemsize) <= budget]
    if not fitting:
        return 1
    lane_ok = [d for d in fitting if (d * W) % 128 == 0]
    return max(lane_ok) if lane_ok else max(fitting)


def _halo_tiles(x_nchw, cdt, ht, nt):
    """(B, C, H, W) -> (B, nt, C, (ht+2*HALO)*W) zero-padded row windows."""
    B, C, _, W = x_nchw.shape
    xp = jnp.pad(x_nchw.astype(cdt), ((0, 0), (0, 0), (_HALO, _HALO), (0, 0)))
    windows = [xp[:, :, t * ht: t * ht + ht + 2 * _HALO, :] for t in range(nt)]
    return jnp.stack(windows, axis=1).reshape(B, nt, C, (ht + 2 * _HALO) * W)


# --------------------------------------------------------------------------- #
# Public entry point                                                           #
# --------------------------------------------------------------------------- #
def fea_fusion(x1_nchw, x2_nchw, params, *,
               compute_dtype=jnp.bfloat16, row_tile=None):
    """FeaFusion.forward.  x1, x2: (B, C, H, W) -> (B, C, H, W)."""
    B, C, H, W = x1_nchw.shape
    if C % 8 != 0:
        raise ValueError("channels must be a multiple of 8 (sublane tile)")
    C4 = C // 4
    C4p = max(8, ((C4 + 7) // 8) * 8)        # pad bottleneck channels to sublanes
    cdt = jnp.dtype(compute_dtype)
    isz = cdt.itemsize

    ht = row_tile if row_tile is not None else _pick_row_tile(H, W, C, C4p, isz)
    if H % ht != 0:
        raise ValueError(f"row_tile={ht} must divide H={H}")
    nt = H // ht
    l0, l3 = (ht + 2 * _HALO) * W, ht * W

    # Haloed, pre-cast input row windows (layout plumbing done once by XLA;
    # the kernel then gets plain non-overlapping, auto-pipelined blocks).
    x1t = _halo_tiles(x1_nchw, cdt, ht, nt)
    x2t = _halo_tiles(x2_nchw, cdt, ht, nt)

    # Weights -> matmul form; layer2_1/2_2 fused along Cin; the C//4
    # bottleneck is zero-padded to C4p channels (numerics unchanged: padded
    # rows carry zero weights and zero bias, and wfu gets zero columns there).
    w1m = _wmat(params["w1"], cdt)
    b1c = _bcol(params["b1"])
    w2_hwio = jnp.concatenate([params["w21"], params["w22"]], axis=2)   # (3,3,2C,C4)
    w2m = _wmat(w2_hwio, cdt, cout_pad=C4p - C4)
    b2c = _bcol(params["b21"] + params["b22"], pad=C4p - C4)
    wfm = _wmat(params["wfu"], cdt, cin_pad=C4p - C4)
    bfc = _bcol(params["bfu"])

    sign = 1 if _roll_matches_jnp() else -1

    tile_spec = pl.BlockSpec((pl.Squeezed(), pl.Squeezed(), C, l0),
                             lambda b, t: (b, t, 0, 0))
    rep = lambda a: pl.BlockSpec(a.shape, lambda b, t: (0,) * a.ndim)

    vmem_limit = int(min(64 * 2**20,
                         max(32 * 2**20, 2 * _vmem_estimate(ht, W, C, C4p, isz))))

    out = pl.pallas_call(
        functools.partial(_feafusion_kernel, img_h=H, img_w=W, ht=ht,
                          roll_sign=sign, cdt=cdt),
        out_shape=jax.ShapeDtypeStruct((B, C, H * W), x1_nchw.dtype),
        grid_spec=pltpu.PrefetchScalarGridSpec(
            num_scalar_prefetch=0,
            grid=(B, nt),                    # row-tile axis is fast-changing
            in_specs=[tile_spec, tile_spec,
                      rep(w1m), rep(b1c), rep(w2m), rep(b2c),
                      rep(wfm), rep(bfc)],
            out_specs=pl.BlockSpec((pl.Squeezed(), C, l3), lambda b, t: (b, 0, t)),
        ),
        compiler_params=pltpu.CompilerParams(
            dimension_semantics=("parallel", "parallel"),   # v7x: 2 TCs busy at B=1
            vmem_limit_bytes=vmem_limit),
    )(x1t, x2t, w1m, b1c, w2m, b2c, wfm, bfc)

    return out.reshape(B, C, H, W)


# ----------------------------- pure-JAX reference -----------------------------
def _conv_ref(x_nchw, w_hwio, b_1c):
    w_oihw = jnp.transpose(w_hwio, (3, 2, 0, 1))
    y = jax.lax.conv_general_dilated(
        x_nchw, w_oihw, window_strides=(1, 1), padding=((1, 1), (1, 1)),
        dimension_numbers=("NCHW", "OIHW", "NCHW"))
    return y + b_1c.reshape(1, -1, 1, 1)


def fea_fusion_ref(x1, x2, p):
    ww = jax.nn.sigmoid(_conv_ref(x1 + x2, p["w1"], p["b1"]))
    xw1 = x1 + x1 * ww
    xw2 = x2 + x2 * ww
    x1_2 = _conv_ref(xw1, p["w21"], p["b21"])
    x2_2 = _conv_ref(xw2, p["w22"], p["b22"])
    return jnp.maximum(_conv_ref(x1_2 + x2_2, p["wfu"], p["bfu"]), 0.0)


# ------------------------------------ main ------------------------------------
if __name__ == "__main__":
    B, C, H, W = 2, 8, 16, 16      # channels divisible by 4 (module) and 8 (kernel)
    C4 = C // 4

    key = jax.random.PRNGKey(0)
    keys = jax.random.split(key, 10)

    # Deterministic synthetic parameters (HWIO weight layout), not a checkpoint.
    params = {
        "w1":  0.1 * jax.random.normal(keys[0], (3, 3, C, C),  jnp.float32),
        "b1":  0.1 * jax.random.normal(keys[1], (1, C),        jnp.float32),
        "w21": 0.1 * jax.random.normal(keys[2], (3, 3, C, C4), jnp.float32),
        "b21": 0.1 * jax.random.normal(keys[3], (1, C4),       jnp.float32),
        "w22": 0.1 * jax.random.normal(keys[4], (3, 3, C, C4), jnp.float32),
        "b22": 0.1 * jax.random.normal(keys[5], (1, C4),       jnp.float32),
        "wfu": 0.1 * jax.random.normal(keys[6], (3, 3, C4, C), jnp.float32),
        "bfu": 0.1 * jax.random.normal(keys[7], (1, C),        jnp.float32),
    }

    x1 = jax.random.normal(keys[8], (B, C, H, W), jnp.float32)
    x2 = jax.random.normal(keys[9], (B, C, H, W), jnp.float32)

    ref = jax.block_until_ready(fea_fusion_ref(x1, x2, params))

    # f32, auto row-tile (whole image fits one tile at this size): exact check.
    out = jax.block_until_ready(
        fea_fusion(x1, x2, params, compute_dtype=jnp.float32))
    assert out.shape == (B, C, H, W), out.shape
    assert jnp.allclose(out, ref, rtol=1e-4, atol=1e-4), \
        float(jnp.max(jnp.abs(out - ref)))

    # f32, forced 8-row tiles (exercises the row-halo tiling path, l3 = 128).
    out_t = jax.block_until_ready(
        fea_fusion(x1, x2, params, compute_dtype=jnp.float32, row_tile=8))
    assert jnp.allclose(out_t, ref, rtol=1e-4, atol=1e-4), \
        float(jnp.max(jnp.abs(out_t - ref)))

    # bf16 fast path (early activation cast + bf16 rolls/masks/slabs), tiled.
    out_bf16 = jax.block_until_ready(
        fea_fusion(x1, x2, params, compute_dtype=jnp.bfloat16, row_tile=8))
    assert jnp.allclose(out_bf16, ref, rtol=2e-1, atol=2e-1), \
        float(jnp.max(jnp.abs(out_bf16 - ref)))

    print("KERNEL_OK")
</pallas_src>

<mosaic_0001>
module attributes {stable_mosaic.version = 11 : i64} {
  func.func @kernel(%arg0: memref<8x128xf32, #tpu.memory_space<vmem>>, %arg1: memref<8x128xf32, #tpu.memory_space<vmem>>) attributes {dimension_semantics = [], scalar_prefetch = 0 : i64, scratch_operands = 0 : i64, tpu.core_type = #tpu.core_type<tc>} {
    %c0 = arith.constant 0 : index
    %c0_0 = arith.constant 0 : index
    %0 = vector.load %arg0[%c0, %c0_0] : memref<8x128xf32, #tpu.memory_space<vmem>>, vector<8x128xf32>
    %c1_i32 = arith.constant 1 : i32
    %1 = tpu.dynamic_rotate %0 by %c1_i32 dim 1 : vector<8x128xf32>, i32 -> vector<8x128xf32>
    %c0_1 = arith.constant 0 : index
    %c0_2 = arith.constant 0 : index
    %2 = vector.load %arg1[%c0_1, %c0_2] : memref<8x128xf32, #tpu.memory_space<vmem>>, vector<8x128xf32>
    tpu.vector_store %arg1[%c0_1, %c0_2], %1 {strides = array<i32>} : memref<8x128xf32, #tpu.memory_space<vmem>>, vector<8x128xf32>,
    return
  }
}

</mosaic_0001>

<llo_original>
// kernel: tpu_custom_call.1
$region0: #{tpu_custom_call.1}
  #allocation0 [shape = 'u32[]', space=smem, size = 0x4, offset = 0x4, fixed_abs, tag = 'smem constant byte address 0x4 - core index']
  #allocation1 [shape = 'u32[144,128]{1,0:T(1,128)}', space=vmem, size = 0x12000, scoped, tag = 'internal scratch']
  %s0 = inlined_call_operand.hbm [shape: f32[8,128], index: 0, kind: input, shape index: {}]
  %s1 = inlined_call_operand.hbm [shape: f32[8,128], index: 1, kind: output, shape index: {}]
  %s2 = sld [smem:[#allocation0]]
  $region18: #{tpu_custom_call.1} parent=0
    _
  %s4 = ssub.s32 1, %s2
  %s5 = scalar_select 0, %s4, %s2
  $region1: #{tpu_custom_call.1} parent=0
    #allocation2 [shape = 'u8[4096]{0}', space=vmem, size = 0x1000, scoped, tag = 'input window, operand 0, single buffered']
    #allocation3 [shape = 's32[1]{0}', space=sflag, size = 0x4, scoped, tag = 'scoped memory for tpu_custom_call.1']
    #allocation4 [shape = 's32[1]{0}', space=sflag, size = 0x4, scoped, tag = 'scoped memory for tpu_custom_call.1']
    #allocation5 [shape = 'u8[4096]{0}', space=vmem, size = 0x1000, scoped, tag = 'output window, operand 0, single buffered']
    %6 = vsyncpa [#allocation3], 0
    %7 = vsyncpa [#allocation4], 0
    // Predicated region
    $region2: #{tpu_custom_call.1} parent=1 // pred_check
      _
    $region3: #{tpu_custom_call.1} parent=1 // pred_check_branch
      %9 = sbr.rel (0) target = $region5
    $region4: #{tpu_custom_call.1} parent=1 // pred_region
      %s11 = ssub.s32 128, 128
      %12 = vsyncadd [#allocation3], %s11
      %s14 = sshll.u32 [#allocation2], 4
      %s15 = int_to_ptr.vmem [resolvable:$true] %s14
      %17 = dma.hbm_to_vmem [thread:$0]  %s0, 128, %s15, [#allocation3]
    $region5: #{tpu_custom_call.1} parent=1 // pred_fallthru
      _
    // Predicated region
    $region6: #{tpu_custom_call.1} parent=1 // pred_check
      _
    $region7: #{tpu_custom_call.1} parent=1 // pred_check_branch
      %19 = sbr.rel (0) target = $region9
    $region8: #{tpu_custom_call.1} parent=1 // pred_region
      %20 = dma.done [#allocation3], 128
    $region9: #{tpu_custom_call.1} parent=1 // pred_fallthru
      _
    %v21 = vld [vmem:[#allocation2] sm:$0xff]
    %22 = vrot.lane.b32.xlu0 %v21, 1
    %v23 = vpop.permute.xlu0 %22
    %24 = vst [vmem:[#allocation5] sm:$0xff] %v23
    // Predicated region
    $region10: #{tpu_custom_call.1} parent=1 // pred_check
      _
    $region11: #{tpu_custom_call.1} parent=1 // pred_check_branch
      %26 = sbr.rel (0) target = $region13
    $region12: #{tpu_custom_call.1} parent=1 // pred_region
      %s28 = ssub.s32 128, 128
      %29 = vsyncadd [#allocation4], %s28
      %s31 = sshll.u32 [#allocation5], 4
      %s32 = int_to_ptr.vmem [resolvable:$true] %s31
      %34 = dma.vmem_to_hbm [thread:$0]  %s32, 128, %s1, [#allocation4]
    $region13: #{tpu_custom_call.1} parent=1 // pred_fallthru
      _
    // Predicated region
    $region14: #{tpu_custom_call.1} parent=1 // pred_check
      _
    $region15: #{tpu_custom_call.1} parent=1 // pred_check_branch
      %36 = sbr.rel (0) target = $region17
    $region16: #{tpu_custom_call.1} parent=1 // pred_region
      %37 = dma.done [#allocation4], 128
    $region17: #{tpu_custom_call.1} parent=1 // pred_fallthru
      _
    %38 = vsyncpa [#allocation3], 1
    %39 = vsyncpa [#allocation4], 1

</llo_original>
